<compile_context>
chip_gen: v7x
topology: tpu7x:2x2x1
jax: 0.10.0
libtpu: 0.0.40
codegen_flags: <defaults>
</compile_context>

<pallas_src>
import numpy as np
import jax
import jax.numpy as jnp
from jax import lax
from jax.experimental import pallas as pl
from jax.experimental.pallas import tpu as pltpu

KERNEL_SIZE = 7
PAD = KERNEL_SIZE // 2
STRIP = 1024  # lane-strip width for the reduce / conv phases (bounds vreg pressure)


def _strip_plan(HW, ws):
    """Static (start, width) lane strips covering [0, HW)."""
    if HW <= ws:
        return [(0, HW)]
    strips = [(i * ws, ws) for i in range(HW // ws)]
    rem = HW - (HW // ws) * ws
    if rem:
        strips.append(((HW // ws) * ws, rem))
    return strips


def _make_spatial_attention_kernel(C, H, W):
    HW = H * W
    OFF = PAD * W + PAD          # offset of the map inside the padded flat buffer
    L = HW + 2 * OFF             # padded flat buffer length
    HW6 = HW + 2 * PAD           # shifted-row length (covers kx = 0..6)
    n_main = C // 8              # number of full 8-row channel chunks
    C_main = n_main * 8
    C_tail = C - C_main          # 0..7 leftover channels
    strips = _strip_plan(HW, STRIP)

    def kernel(x_ref, w_ref, o_ref, pad_ref, shifted_ref, attn_ref):
        # x_ref:       (C, HW)      VMEM, one batch element, lane-dense
        # w_ref:       (16, 8)      VMEM, row c*8+ky, col kx (ch-0 pre-scaled by 1/C)
        # o_ref:       (C, HW)      VMEM
        # pad_ref:     (2, L)       VMEM f32, row-padded flat [avg, max] maps
        # shifted_ref: (16, HW+6)   VMEM f32, row c*8+ky = pad[c, ky*W : ky*W+HW+6]
        # attn_ref:    (8, HW)      VMEM, attention row broadcast over 8 sublanes

        # ---- zero only the halo strips (interior fully overwritten each step) ----
        # NOTE: re-zeroed every grid step; a "once per core" guard needs a reliably
        # initialized per-core flag (program_id(0)==0 is wrong under megacore
        # sharding) and the cost here is only ~2*(3W+3) lanes.
        pad_ref[:, 0:OFF] = jnp.zeros((2, OFF), jnp.float32)
        pad_ref[:, OFF + HW:L] = jnp.zeros((2, L - OFF - HW), jnp.float32)

        # ---- Phase 1: fused channel max / channel sum, lane-strip tiled ----------
        for (p0, ws) in strips:
            m1 = None
            s1 = None
            if n_main >= 1:
                blk0 = x_ref[pl.ds(0, 8), pl.ds(p0, ws)]
                run_max = blk0
                run_sum = blk0.astype(jnp.float32)
                if n_main > 1:
                    def body(i, carry, _p0=p0, _ws=ws):
                        m, s = carry
                        c0 = pl.multiple_of(i * 8, 8)
                        blk = x_ref[pl.ds(c0, 8), pl.ds(_p0, _ws)]
                        return jnp.maximum(m, blk), s + blk.astype(jnp.float32)
                    run_max, run_sum = lax.fori_loop(
                        1, n_main, body, (run_max, run_sum), unroll=n_main <= 8)
                m1 = jnp.max(run_max, axis=0, keepdims=True).astype(jnp.float32)
                s1 = jnp.sum(run_sum, axis=0, keepdims=True)
            if C_tail:
                blk_t = x_ref[pl.ds(C_main, C_tail), pl.ds(p0, ws)]
                mt = jnp.max(blk_t, axis=0, keepdims=True).astype(jnp.float32)
                st = jnp.sum(blk_t.astype(jnp.float32), axis=0, keepdims=True)
                if m1 is None:
                    m1, s1 = mt, st
                else:
                    m1 = jnp.maximum(m1, mt)
                    s1 = s1 + st
            pad_ref[0:1, OFF + p0:OFF + p0 + ws] = s1   # ch 0: sum (1/C in weights)
            pad_ref[1:2, OFF + p0:OFF + p0 + ws] = m1   # ch 1: max

        # ---- Phase 2: build the 14 shifted rows (ky shifts of the flat maps) -----
        for c in range(2):
            for ky in range(KERNEL_SIZE):
                r = c * 8 + ky
                shifted_ref[r:r + 1, :] = pad_ref[c:c + 1, ky * W:ky * W + HW6]

        # ---- Phase 3: 7x7 "same" conv (2 -> 1 ch) + sigmoid, strip by strip ------
        # For output pixel p = y*W + x and tap (c, ky, kx):
        #   source = shifted_ref[c*8+ky, p + kx] = pad[c, p + ky*W + kx]
        # valid iff 0 <= x + kx - PAD < W (row wrap masked; y handled by zero halo).
        for (p0, ws) in strips:
            col = (lax.broadcasted_iota(jnp.int32, (1, ws), 1) + p0) % W
            acc = jnp.zeros((KERNEL_SIZE, ws), jnp.float32)
            for kx in range(KERNEL_SIZE):
                w0 = w_ref[0:KERNEL_SIZE, kx:kx + 1]          # (7,1) avg-channel col
                w1 = w_ref[8:8 + KERNEL_SIZE, kx:kx + 1]      # (7,1) max-channel col
                blk0 = shifted_ref[0:KERNEL_SIZE, p0 + kx:p0 + kx + ws]
                blk1 = shifted_ref[8:8 + KERNEL_SIZE, p0 + kx:p0 + kx + ws]
                part = w0 * blk0 + w1 * blk1                  # (7, ws) dense FMAs
                lo = PAD - kx
                hi = W + PAD - kx
                if lo <= 0 and hi >= W:                       # always-valid tap column
                    acc = acc + part
                else:
                    ok = (col >= lo) & (col < hi)
                    acc = acc + jnp.where(ok, part, 0.0)
            conv = jnp.sum(acc, axis=0, keepdims=True)        # (1, ws) sublane reduce
            a = jax.nn.sigmoid(conv).astype(attn_ref.dtype)   # bf16 fast path if set
            attn_ref[:, p0:p0 + ws] = jnp.broadcast_to(a, (8, ws))

        # ---- Phase 4: lane-dense broadcast multiply + unmasked stores ------------
        if n_main >= 1:
            def mul_body(i, carry):
                r0 = pl.multiple_of(i * 8, 8)
                xb = x_ref[pl.ds(r0, 8), :]
                o_ref[pl.ds(r0, 8), :] = (xb * attn_ref[...]).astype(o_ref.dtype)
                return carry
            lax.fori_loop(0, n_main, mul_body, 0, unroll=n_main <= 8)
        if C_tail:
            xt = x_ref[pl.ds(C_main, C_tail), :]
            o_ref[pl.ds(C_main, C_tail), :] = (
                xt * attn_ref[0:C_tail, :]).astype(o_ref.dtype)

    return kernel


def _tpu_vmem_capacity_and_gen():
    """Best-effort (capacity_bytes, is_v5) query; safe fallbacks if unavailable."""
    cap = None
    try:
        cap = int(pltpu.get_tpu_info().vmem_capacity_bytes)
    except Exception:
        cap = None
    kind = ""
    try:
        kind = jax.devices()[0].device_kind.lower()
    except Exception:
        kind = ""
    if cap is None:
        cap = (64 << 20) if "v7" in kind else (128 << 20)
    is_v5 = "v5" in kind
    return cap, is_v5


def spatial_attention(x, w):
    """x: (B, C, H, W), w: (1, 2, 7, 7) -> (B, C, H, W). Matches the PyTorch module."""
    B, C, H, W = x.shape
    HW = H * W
    OFF = PAD * W + PAD
    L = HW + 2 * OFF
    HW6 = HW + 2 * PAD

    capacity, is_v5 = _tpu_vmem_capacity_and_gen()
    # bf16 fast path for the dominant multiply on v6e/v7x; keep f32 attn on v5e.
    cast_attn = (x.dtype != jnp.float32) and (not is_v5)
    attn_scratch_dtype = x.dtype if cast_attn else jnp.float32

    # Conv weights as a (16, 8) VMEM table: row c*8+ky, col kx; the 1/C mean
    # scaling is folded into the channel-0 (avg) weights.
    w_f = w.astype(jnp.float32).reshape(2, KERNEL_SIZE, KERNEL_SIZE)
    w_mat = jnp.zeros((16, 8), jnp.float32)
    w_mat = w_mat.at[0:KERNEL_SIZE, 0:KERNEL_SIZE].set(w_f[0] * (1.0 / C))
    w_mat = w_mat.at[8:8 + KERNEL_SIZE, 0:KERNEL_SIZE].set(w_f[1])

    # Lane-dense layout: collapse (H, W) -> H*W (free trailing-dim reshape).
    x_flat = x.reshape(B, C, HW)

    # Per-step VMEM budget: double-buffered in + out blocks + scratch + headroom,
    # capped generation-aware (v7x: 64 MiB physical, v5e/v6e: 128 MiB).
    itemsize = jnp.dtype(x.dtype).itemsize
    attn_itemsize = jnp.dtype(attn_scratch_dtype).itemsize
    block_bytes = C * HW * itemsize
    scratch_bytes = (2 * L * 4) + (16 * HW6 * 4) + (8 * HW * attn_itemsize) + (2 * 16 * 8 * 4)
    needed = 4 * block_bytes + scratch_bytes + (4 << 20)
    vmem_cap = min(capacity - (12 << 20), (capacity * 17) // 20)  # ~52 MiB @64, ~108 MiB @128
    vmem_limit = int(min(max(needed, 32 << 20), vmem_cap))
    # TODO(synk): if needed > vmem_cap (huge C*HW per batch, mainly v7x), switch to an
    # H-row-band grid axis with a 3-row halo instead of clamping.

    kernel = _make_spatial_attention_kernel(C, H, W)

    out_flat = pl.pallas_call(
        kernel,
        out_shape=jax.ShapeDtypeStruct((B, C, HW), x.dtype),
        grid=(B,),
        in_specs=[
            pl.BlockSpec((None, C, HW), lambda b: (b, 0, 0)),
            pl.BlockSpec((16, 8), lambda b: (0, 0)),
        ],
        out_specs=pl.BlockSpec((None, C, HW), lambda b: (b, 0, 0)),
        scratch_shapes=[
            pltpu.VMEM((2, L), jnp.float32),          # padded flat [avg, max] maps
            pltpu.VMEM((16, HW6), jnp.float32),       # ky-shifted rows (7 per channel)
            pltpu.VMEM((8, HW), attn_scratch_dtype),  # attn, 8-sublane materialized
        ],
        compiler_params=pltpu.CompilerParams(
            dimension_semantics=("parallel",),
            vmem_limit_bytes=vmem_limit,
        ),
    )(x_flat, w_mat)

    return out_flat.reshape(B, C, H, W)


def spatial_attention_reference(x, w):
    """Pure-JAX reference matching the PyTorch forward."""
    max_out = jnp.max(x, axis=1, keepdims=True)
    avg_out = jnp.mean(x, axis=1, keepdims=True)
    cat = jnp.concatenate([avg_out, max_out], axis=1)
    conv = jax.lax.conv_general_dilated(
        cat, w, window_strides=(1, 1), padding=[(PAD, PAD), (PAD, PAD)],
        dimension_numbers=("NCHW", "OIHW", "NCHW"))
    return x * jax.nn.sigmoid(conv)


if __name__ == "__main__":
    key = jax.random.PRNGKey(0)
    k_x, k_w = jax.random.split(key)

    B, C, H, W = 2, 4, 16, 16
    x = jax.random.normal(k_x, (B, C, H, W), dtype=jnp.float32)
    # Deterministic synthetic Conv2d(2, 1, 7, bias=False) weights.
    w = jax.random.normal(k_w, (1, 2, KERNEL_SIZE, KERNEL_SIZE), dtype=jnp.float32) * 0.1

    out = jax.block_until_ready(spatial_attention(x, w))
    ref = jax.block_until_ready(spatial_attention_reference(x, w))
    np.testing.assert_allclose(np.asarray(out), np.asarray(ref), rtol=1e-5, atol=1e-5)
    print("KERNEL_OK")
</pallas_src>

<mosaic_0001>
module attributes {stable_mosaic.version = 11 : i64} {
  func.func @kernel(%arg0: i32, %arg1: memref<1x4x256xf32, #tpu.memory_space<vmem>>, %arg2: memref<16x8xf32, #tpu.memory_space<vmem>>, %arg3: memref<1x4x256xf32, #tpu.memory_space<vmem>>, %arg4: memref<2x358xf32, #tpu.memory_space<vmem>>, %arg5: memref<16x262xf32, #tpu.memory_space<vmem>>, %arg6: memref<8x256xf32, #tpu.memory_space<vmem>>) attributes {dimension_semantics = [#tpu.dimension_semantics<parallel>], iteration_bounds = array<i64: 2>, scalar_prefetch = 0 : i64, scratch_operands = 3 : i64, tpu.core_type = #tpu.core_type<tc>, window_params = [{transform_indices = @transform_0, window_bounds = array<i64: 1, 4, 256>}, {pipeline_mode = #tpu.pipeline_mode<synchronous>, transform_indices = @transform_1, window_bounds = array<i64: 16, 8>}, {transform_indices = @transform_2, window_bounds = array<i64: 1, 4, 256>}]} {
    %cst = arith.constant 0.000000e+00 : f32
    %0 = vector.broadcast %cst : f32 to vector<2x51xf32>
    %c0 = arith.constant 0 : index
    %c0_0 = arith.constant 0 : index
    %1 = vector.load %arg4[%c0, %c0_0] : memref<2x358xf32, #tpu.memory_space<vmem>>, vector<2x51xf32>
    tpu.vector_store %arg4[%c0, %c0_0], %0 {strides = array<i32>} : memref<2x358xf32, #tpu.memory_space<vmem>>, vector<2x51xf32>,
    %cst_1 = arith.constant 0.000000e+00 : f32
    %2 = vector.broadcast %cst_1 : f32 to vector<2x51xf32>
    %c0_2 = arith.constant 0 : index
    %c307 = arith.constant 307 : index
    %3 = vector.load %arg4[%c0_2, %c307] : memref<2x358xf32, #tpu.memory_space<vmem>>, vector<2x51xf32>
    tpu.vector_store %arg4[%c0_2, %c307], %2 {strides = array<i32>} : memref<2x358xf32, #tpu.memory_space<vmem>>, vector<2x51xf32>,
    %c0_3 = arith.constant 0 : index
    %c0_4 = arith.constant 0 : index
    %c0_5 = arith.constant 0 : index
    %4 = vector.load %arg1[%c0_3, %c0_4, %c0_5] : memref<1x4x256xf32, #tpu.memory_space<vmem>>, vector<1x4x256xf32>
    %5 = vector.shape_cast %4 : vector<1x4x256xf32> to vector<4x256xf32>
    %cst_6 = arith.constant dense<0xFF800000> : vector<256xf32>
    %6 = vector.multi_reduction <maximumf>, %5, %cst_6 [0] : vector<4x256xf32> to vector<256xf32>
    %7 = vector.shape_cast %6 : vector<256xf32> to vector<1x256xf32>
    %cst_7 = arith.constant dense<0.000000e+00> : vector<256xf32>
    %8 = vector.multi_reduction <add>, %5, %cst_7 [0] : vector<4x256xf32> to vector<256xf32>
    %9 = vector.shape_cast %8 : vector<256xf32> to vector<1x256xf32>
    %c0_8 = arith.constant 0 : index
    %c51 = arith.constant 51 : index
    %10 = vector.load %arg4[%c0_8, %c51] : memref<2x358xf32, #tpu.memory_space<vmem>>, vector<1x256xf32>
    tpu.vector_store %arg4[%c0_8, %c51], %9 {strides = array<i32>} : memref<2x358xf32, #tpu.memory_space<vmem>>, vector<1x256xf32>,
    %c1 = arith.constant 1 : index
    %c51_9 = arith.constant 51 : index
    %11 = vector.load %arg4[%c1, %c51_9] : memref<2x358xf32, #tpu.memory_space<vmem>>, vector<1x256xf32>
    tpu.vector_store %arg4[%c1, %c51_9], %7 {strides = array<i32>} : memref<2x358xf32, #tpu.memory_space<vmem>>, vector<1x256xf32>,
    %c0_10 = arith.constant 0 : index
    %c0_11 = arith.constant 0 : index
    %12 = vector.load %arg4[%c0_10, %c0_11] : memref<2x358xf32, #tpu.memory_space<vmem>>, vector<1x262xf32>
    %c0_12 = arith.constant 0 : index
    %c0_13 = arith.constant 0 : index
    %13 = vector.load %arg5[%c0_12, %c0_13] : memref<16x262xf32, #tpu.memory_space<vmem>>, vector<1x262xf32>
    tpu.vector_store %arg5[%c0_12, %c0_13], %12 {strides = array<i32>} : memref<16x262xf32, #tpu.memory_space<vmem>>, vector<1x262xf32>,
    %c0_14 = arith.constant 0 : index
    %c16 = arith.constant 16 : index
    %14 = vector.load %arg4[%c0_14, %c16] : memref<2x358xf32, #tpu.memory_space<vmem>>, vector<1x262xf32>
    %c1_15 = arith.constant 1 : index
    %c0_16 = arith.constant 0 : index
    %15 = vector.load %arg5[%c1_15, %c0_16] : memref<16x262xf32, #tpu.memory_space<vmem>>, vector<1x262xf32>
    tpu.vector_store %arg5[%c1_15, %c0_16], %14 {strides = array<i32>} : memref<16x262xf32, #tpu.memory_space<vmem>>, vector<1x262xf32>,
    %c0_17 = arith.constant 0 : index
    %c32 = arith.constant 32 : index
    %16 = vector.load %arg4[%c0_17, %c32] : memref<2x358xf32, #tpu.memory_space<vmem>>, vector<1x262xf32>
    %c2 = arith.constant 2 : index
    %c0_18 = arith.constant 0 : index
    %17 = vector.load %arg5[%c2, %c0_18] : memref<16x262xf32, #tpu.memory_space<vmem>>, vector<1x262xf32>
    tpu.vector_store %arg5[%c2, %c0_18], %16 {strides = array<i32>} : memref<16x262xf32, #tpu.memory_space<vmem>>, vector<1x262xf32>,
    %c0_19 = arith.constant 0 : index
    %c48 = arith.constant 48 : index
    %18 = vector.load %arg4[%c0_19, %c48] : memref<2x358xf32, #tpu.memory_space<vmem>>, vector<1x262xf32>
    %c3 = arith.constant 3 : index
    %c0_20 = arith.constant 0 : index
    %19 = vector.load %arg5[%c3, %c0_20] : memref<16x262xf32, #tpu.memory_space<vmem>>, vector<1x262xf32>
    tpu.vector_store %arg5[%c3, %c0_20], %18 {strides = array<i32>} : memref<16x262xf32, #tpu.memory_space<vmem>>, vector<1x262xf32>,
    %c0_21 = arith.constant 0 : index
    %c64 = arith.constant 64 : index
    %20 = vector.load %arg4[%c0_21, %c64] : memref<2x358xf32, #tpu.memory_space<vmem>>, vector<1x262xf32>
    %c4 = arith.constant 4 : index
    %c0_22 = arith.constant 0 : index
    %21 = vector.load %arg5[%c4, %c0_22] : memref<16x262xf32, #tpu.memory_space<vmem>>, vector<1x262xf32>
    tpu.vector_store %arg5[%c4, %c0_22], %20 {strides = array<i32>} : memref<16x262xf32, #tpu.memory_space<vmem>>, vector<1x262xf32>,
    %c0_23 = arith.constant 0 : index
    %c80 = arith.constant 80 : index
    %22 = vector.load %arg4[%c0_23, %c80] : memref<2x358xf32, #tpu.memory_space<vmem>>, vector<1x262xf32>
    %c5 = arith.constant 5 : index
    %c0_24 = arith.constant 0 : index
    %23 = vector.load %arg5[%c5, %c0_24] : memref<16x262xf32, #tpu.memory_space<vmem>>, vector<1x262xf32>
    tpu.vector_store %arg5[%c5, %c0_24], %22 {strides = array<i32>} : memref<16x262xf32, #tpu.memory_space<vmem>>, vector<1x262xf32>,
    %c0_25 = arith.constant 0 : index
    %c96 = arith.constant 96 : index
    %24 = vector.load %arg4[%c0_25, %c96] : memref<2x358xf32, #tpu.memory_space<vmem>>, vector<1x262xf32>
    %c6 = arith.constant 6 : index
    %c0_26 = arith.constant 0 : index
    %25 = vector.load %arg5[%c6, %c0_26] : memref<16x262xf32, #tpu.memory_space<vmem>>, vector<1x262xf32>
    tpu.vector_store %arg5[%c6, %c0_26], %24 {strides = array<i32>} : memref<16x262xf32, #tpu.memory_space<vmem>>, vector<1x262xf32>,
    %c1_27 = arith.constant 1 : index
    %c0_28 = arith.constant 0 : index
    %26 = vector.load %arg4[%c1_27, %c0_28] : memref<2x358xf32, #tpu.memory_space<vmem>>, vector<1x262xf32>
    %c8 = arith.constant 8 : index
    %c0_29 = arith.constant 0 : index
    %27 = vector.load %arg5[%c8, %c0_29] : memref<16x262xf32, #tpu.memory_space<vmem>>, vector<1x262xf32>
    tpu.vector_store %arg5[%c8, %c0_29], %26 {strides = array<i32>} : memref<16x262xf32, #tpu.memory_space<vmem>>, vector<1x262xf32>,
    %c1_30 = arith.constant 1 : index
    %c16_31 = arith.constant 16 : index
    %28 = vector.load %arg4[%c1_30, %c16_31] : memref<2x358xf32, #tpu.memory_space<vmem>>, vector<1x262xf32>
    %c9 = arith.constant 9 : index
    %c0_32 = arith.constant 0 : index
    %29 = vector.load %arg5[%c9, %c0_32] : memref<16x262xf32, #tpu.memory_space<vmem>>, vector<1x262xf32>
    tpu.vector_store %arg5[%c9, %c0_32], %28 {strides = array<i32>} : memref<16x262xf32, #tpu.memory_space<vmem>>, vector<1x262xf32>,
    %c1_33 = arith.constant 1 : index
    %c32_34 = arith.constant 32 : index
    %30 = vector.load %arg4[%c1_33, %c32_34] : memref<2x358xf32, #tpu.memory_space<vmem>>, vector<1x262xf32>
    %c10 = arith.constant 10 : index
    %c0_35 = arith.constant 0 : index
    %31 = vector.load %arg5[%c10, %c0_35] : memref<16x262xf32, #tpu.memory_space<vmem>>, vector<1x262xf32>
    tpu.vector_store %arg5[%c10, %c0_35], %30 {strides = array<i32>} : memref<16x262xf32, #tpu.memory_space<vmem>>, vector<1x262xf32>,
    %c1_36 = arith.constant 1 : index
    %c48_37 = arith.constant 48 : index
    %32 = vector.load %arg4[%c1_36, %c48_37] : memref<2x358xf32, #tpu.memory_space<vmem>>, vector<1x262xf32>
    %c11 = arith.constant 11 : index
    %c0_38 = arith.constant 0 : index
    %33 = vector.load %arg5[%c11, %c0_38] : memref<16x262xf32, #tpu.memory_space<vmem>>, vector<1x262xf32>
    tpu.vector_store %arg5[%c11, %c0_38], %32 {strides = array<i32>} : memref<16x262xf32, #tpu.memory_space<vmem>>, vector<1x262xf32>,
    %c1_39 = arith.constant 1 : index
    %c64_40 = arith.constant 64 : index
    %34 = vector.load %arg4[%c1_39, %c64_40] : memref<2x358xf32, #tpu.memory_space<vmem>>, vector<1x262xf32>
    %c12 = arith.constant 12 : index
    %c0_41 = arith.constant 0 : index
    %35 = vector.load %arg5[%c12, %c0_41] : memref<16x262xf32, #tpu.memory_space<vmem>>, vector<1x262xf32>
    tpu.vector_store %arg5[%c12, %c0_41], %34 {strides = array<i32>} : memref<16x262xf32, #tpu.memory_space<vmem>>, vector<1x262xf32>,
    %c1_42 = arith.constant 1 : index
    %c80_43 = arith.constant 80 : index
    %36 = vector.load %arg4[%c1_42, %c80_43] : memref<2x358xf32, #tpu.memory_space<vmem>>, vector<1x262xf32>
    %c13 = arith.constant 13 : index
    %c0_44 = arith.constant 0 : index
    %37 = vector.load %arg5[%c13, %c0_44] : memref<16x262xf32, #tpu.memory_space<vmem>>, vector<1x262xf32>
    tpu.vector_store %arg5[%c13, %c0_44], %36 {strides = array<i32>} : memref<16x262xf32, #tpu.memory_space<vmem>>, vector<1x262xf32>,
    %c1_45 = arith.constant 1 : index
    %c96_46 = arith.constant 96 : index
    %38 = vector.load %arg4[%c1_45, %c96_46] : memref<2x358xf32, #tpu.memory_space<vmem>>, vector<1x262xf32>
    %c14 = arith.constant 14 : index
    %c0_47 = arith.constant 0 : index
    %39 = vector.load %arg5[%c14, %c0_47] : memref<16x262xf32, #tpu.memory_space<vmem>>, vector<1x262xf32>
    tpu.vector_store %arg5[%c14, %c0_47], %38 {strides = array<i32>} : memref<16x262xf32, #tpu.memory_space<vmem>>, vector<1x262xf32>,
    %40 = tpu.iota {dimensions = array<i32: 1>} : vector<1x256xi32>
    %c0_i32 = arith.constant 0 : i32
    %41 = vector.broadcast %c0_i32 : i32 to vector<1x256xi32>
    %42 = arith.addi %40, %41 : vector<1x256xi32>
    %c16_i32 = arith.constant 16 : i32
    %c0_i32_48 = arith.constant 0 : i32
    %43 = arith.cmpi eq, %c16_i32, %c0_i32_48 : i32
    %c1_i32 = arith.constant 1 : i32
    %44 = arith.select %43, %c1_i32, %c16_i32 : i32
    %45 = vector.broadcast %44 : i32 to vector<1x256xi32>
    %46 = arith.remsi %42, %45 : vector<1x256xi32>
    %c0_i32_49 = arith.constant 0 : i32
    %47 = vector.broadcast %c0_i32_49 : i32 to vector<1x256xi32>
    %48 = arith.cmpi ne, %46, %47 : vector<1x256xi32>
    %c0_i32_50 = arith.constant 0 : i32
    %49 = vector.broadcast %c0_i32_50 : i32 to vector<1x256xi32>
    %50 = arith.cmpi slt, %46, %49 : vector<1x256xi32>
    %c0_i32_51 = arith.constant 0 : i32
    %51 = arith.cmpi slt, %44, %c0_i32_51 : i32
    %52 = vector.broadcast %51 : i1 to vector<1x256xi1>
    %53 = vector.broadcast %52 : vector<1x256xi1> to vector<1x256xi1>
    %54 = arith.xori %50, %53 : vector<1x256xi1>
    %55 = arith.andi %54, %48 : vector<1x256xi1>
    %56 = vector.broadcast %44 : i32 to vector<1x256xi32>
    %57 = arith.addi %46, %56 : vector<1x256xi32>
    %58 = arith.select %55, %57, %46 : vector<1x256xi1>, vector<1x256xi32>
    %cst_52 = arith.constant 0.000000e+00 : f32
    %59 = vector.broadcast %cst_52 : f32 to vector<7x256xf32>
    %c0_53 = arith.constant 0 : index
    %c0_54 = arith.constant 0 : index
    %60 = vector.load %arg2[%c0_53, %c0_54] : memref<16x8xf32, #tpu.memory_space<vmem>>, vector<7x1xf32>
    %c8_55 = arith.constant 8 : index
    %c0_56 = arith.constant 0 : index
    %61 = vector.load %arg2[%c8_55, %c0_56] : memref<16x8xf32, #tpu.memory_space<vmem>>, vector<7x1xf32>
    %c0_57 = arith.constant 0 : index
    %c0_58 = arith.constant 0 : index
    %62 = vector.load %arg5[%c0_57, %c0_58] : memref<16x262xf32, #tpu.memory_space<vmem>>, vector<7x256xf32>
    %c8_59 = arith.constant 8 : index
    %c0_60 = arith.constant 0 : index
    %63 = vector.load %arg5[%c8_59, %c0_60] : memref<16x262xf32, #tpu.memory_space<vmem>>, vector<7x256xf32>
    %64 = vector.broadcast %60 : vector<7x1xf32> to vector<7x256xf32>
    %65 = arith.mulf %64, %62 : vector<7x256xf32>
    %66 = vector.broadcast %61 : vector<7x1xf32> to vector<7x256xf32>
    %67 = arith.mulf %66, %63 : vector<7x256xf32>
    %68 = arith.addf %65, %67 : vector<7x256xf32>
    %c3_i32 = arith.constant 3 : i32
    %69 = vector.broadcast %c3_i32 : i32 to vector<1x256xi32>
    %70 = arith.cmpi sge, %58, %69 : vector<1x256xi32>
    %c19_i32 = arith.constant 19 : i32
    %71 = vector.broadcast %c19_i32 : i32 to vector<1x256xi32>
    %72 = arith.cmpi slt, %58, %71 : vector<1x256xi32>
    %73 = arith.andi %70, %72 : vector<1x256xi1>
    %cst_61 = arith.constant 0.000000e+00 : f32
    %74 = vector.shape_cast %73 : vector<1x256xi1> to vector<1x256xi1>
    %75 = vector.broadcast %74 : vector<1x256xi1> to vector<7x256xi1>
    %76 = vector.broadcast %cst_61 : f32 to vector<7x256xf32>
    %77 = arith.select %75, %68, %76 : vector<7x256xi1>, vector<7x256xf32>
    %78 = arith.addf %59, %77 : vector<7x256xf32>
    %c0_62 = arith.constant 0 : index
    %c1_63 = arith.constant 1 : index
    %79 = vector.load %arg2[%c0_62, %c1_63] : memref<16x8xf32, #tpu.memory_space<vmem>>, vector<7x1xf32>
    %c8_64 = arith.constant 8 : index
    %c1_65 = arith.constant 1 : index
    %80 = vector.load %arg2[%c8_64, %c1_65] : memref<16x8xf32, #tpu.memory_space<vmem>>, vector<7x1xf32>
    %c0_66 = arith.constant 0 : index
    %c1_67 = arith.constant 1 : index
    %81 = vector.load %arg5[%c0_66, %c1_67] : memref<16x262xf32, #tpu.memory_space<vmem>>, vector<7x256xf32>
    %c8_68 = arith.constant 8 : index
    %c1_69 = arith.constant 1 : index
    %82 = vector.load %arg5[%c8_68, %c1_69] : memref<16x262xf32, #tpu.memory_space<vmem>>, vector<7x256xf32>
    %83 = vector.broadcast %79 : vector<7x1xf32> to vector<7x256xf32>
    %84 = arith.mulf %83, %81 : vector<7x256xf32>
    %85 = vector.broadcast %80 : vector<7x1xf32> to vector<7x256xf32>
    %86 = arith.mulf %85, %82 : vector<7x256xf32>
    %87 = arith.addf %84, %86 : vector<7x256xf32>
    %c2_i32 = arith.constant 2 : i32
    %88 = vector.broadcast %c2_i32 : i32 to vector<1x256xi32>
    %89 = arith.cmpi sge, %58, %88 : vector<1x256xi32>
    %c18_i32 = arith.constant 18 : i32
    %90 = vector.broadcast %c18_i32 : i32 to vector<1x256xi32>
    %91 = arith.cmpi slt, %58, %90 : vector<1x256xi32>
    %92 = arith.andi %89, %91 : vector<1x256xi1>
    %cst_70 = arith.constant 0.000000e+00 : f32
    %93 = vector.shape_cast %92 : vector<1x256xi1> to vector<1x256xi1>
    %94 = vector.broadcast %93 : vector<1x256xi1> to vector<7x256xi1>
    %95 = vector.broadcast %cst_70 : f32 to vector<7x256xf32>
    %96 = arith.select %94, %87, %95 : vector<7x256xi1>, vector<7x256xf32>
    %97 = arith.addf %78, %96 : vector<7x256xf32>
    %c0_71 = arith.constant 0 : index
    %c2_72 = arith.constant 2 : index
    %98 = vector.load %arg2[%c0_71, %c2_72] : memref<16x8xf32, #tpu.memory_space<vmem>>, vector<7x1xf32>
    %c8_73 = arith.constant 8 : index
    %c2_74 = arith.constant 2 : index
    %99 = vector.load %arg2[%c8_73, %c2_74] : memref<16x8xf32, #tpu.memory_space<vmem>>, vector<7x1xf32>
    %c0_75 = arith.constant 0 : index
    %c2_76 = arith.constant 2 : index
    %100 = vector.load %arg5[%c0_75, %c2_76] : memref<16x262xf32, #tpu.memory_space<vmem>>, vector<7x256xf32>
    %c8_77 = arith.constant 8 : index
    %c2_78 = arith.constant 2 : index
    %101 = vector.load %arg5[%c8_77, %c2_78] : memref<16x262xf32, #tpu.memory_space<vmem>>, vector<7x256xf32>
    %102 = vector.broadcast %98 : vector<7x1xf32> to vector<7x256xf32>
    %103 = arith.mulf %102, %100 : vector<7x256xf32>
    %104 = vector.broadcast %99 : vector<7x1xf32> to vector<7x256xf32>
    %105 = arith.mulf %104, %101 : vector<7x256xf32>
    %106 = arith.addf %103, %105 : vector<7x256xf32>
    %c1_i32_79 = arith.constant 1 : i32
    %107 = vector.broadcast %c1_i32_79 : i32 to vector<1x256xi32>
    %108 = arith.cmpi sge, %58, %107 : vector<1x256xi32>
    %c17_i32 = arith.constant 17 : i32
    %109 = vector.broadcast %c17_i32 : i32 to vector<1x256xi32>
    %110 = arith.cmpi slt, %58, %109 : vector<1x256xi32>
    %111 = arith.andi %108, %110 : vector<1x256xi1>
    %cst_80 = arith.constant 0.000000e+00 : f32
    %112 = vector.shape_cast %111 : vector<1x256xi1> to vector<1x256xi1>
    %113 = vector.broadcast %112 : vector<1x256xi1> to vector<7x256xi1>
    %114 = vector.broadcast %cst_80 : f32 to vector<7x256xf32>
    %115 = arith.select %113, %106, %114 : vector<7x256xi1>, vector<7x256xf32>
    %116 = arith.addf %97, %115 : vector<7x256xf32>
    %c0_81 = arith.constant 0 : index
    %c3_82 = arith.constant 3 : index
    %117 = vector.load %arg2[%c0_81, %c3_82] : memref<16x8xf32, #tpu.memory_space<vmem>>, vector<7x1xf32>
    %c8_83 = arith.constant 8 : index
    %c3_84 = arith.constant 3 : index
    %118 = vector.load %arg2[%c8_83, %c3_84] : memref<16x8xf32, #tpu.memory_space<vmem>>, vector<7x1xf32>
    %c0_85 = arith.constant 0 : index
    %c3_86 = arith.constant 3 : index
    %119 = vector.load %arg5[%c0_85, %c3_86] : memref<16x262xf32, #tpu.memory_space<vmem>>, vector<7x256xf32>
    %c8_87 = arith.constant 8 : index
    %c3_88 = arith.constant 3 : index
    %120 = vector.load %arg5[%c8_87, %c3_88] : memref<16x262xf32, #tpu.memory_space<vmem>>, vector<7x256xf32>
    %121 = vector.broadcast %117 : vector<7x1xf32> to vector<7x256xf32>
    %122 = arith.mulf %121, %119 : vector<7x256xf32>
    %123 = vector.broadcast %118 : vector<7x1xf32> to vector<7x256xf32>
    %124 = arith.mulf %123, %120 : vector<7x256xf32>
    %125 = arith.addf %122, %124 : vector<7x256xf32>
    %126 = arith.addf %116, %125 : vector<7x256xf32>
    %c0_89 = arith.constant 0 : index
    %c4_90 = arith.constant 4 : index
    %127 = vector.load %arg2[%c0_89, %c4_90] : memref<16x8xf32, #tpu.memory_space<vmem>>, vector<7x1xf32>
    %c8_91 = arith.constant 8 : index
    %c4_92 = arith.constant 4 : index
    %128 = vector.load %arg2[%c8_91, %c4_92] : memref<16x8xf32, #tpu.memory_space<vmem>>, vector<7x1xf32>
    %c0_93 = arith.constant 0 : index
    %c4_94 = arith.constant 4 : index
    %129 = vector.load %arg5[%c0_93, %c4_94] : memref<16x262xf32, #tpu.memory_space<vmem>>, vector<7x256xf32>
    %c8_95 = arith.constant 8 : index
    %c4_96 = arith.constant 4 : index
    %130 = vector.load %arg5[%c8_95, %c4_96] : memref<16x262xf32, #tpu.memory_space<vmem>>, vector<7x256xf32>
    %131 = vector.broadcast %127 : vector<7x1xf32> to vector<7x256xf32>
    %132 = arith.mulf %131, %129 : vector<7x256xf32>
    %133 = vector.broadcast %128 : vector<7x1xf32> to vector<7x256xf32>
    %134 = arith.mulf %133, %130 : vector<7x256xf32>
    %135 = arith.addf %132, %134 : vector<7x256xf32>
    %c-1_i32 = arith.constant -1 : i32
    %136 = vector.broadcast %c-1_i32 : i32 to vector<1x256xi32>
    %137 = arith.cmpi sge, %58, %136 : vector<1x256xi32>
    %c15_i32 = arith.constant 15 : i32
    %138 = vector.broadcast %c15_i32 : i32 to vector<1x256xi32>
    %139 = arith.cmpi slt, %58, %138 : vector<1x256xi32>
    %140 = arith.andi %137, %139 : vector<1x256xi1>
    %cst_97 = arith.constant 0.000000e+00 : f32
    %141 = vector.shape_cast %140 : vector<1x256xi1> to vector<1x256xi1>
    %142 = vector.broadcast %141 : vector<1x256xi1> to vector<7x256xi1>
    %143 = vector.broadcast %cst_97 : f32 to vector<7x256xf32>
    %144 = arith.select %142, %135, %143 : vector<7x256xi1>, vector<7x256xf32>
    %145 = arith.addf %126, %144 : vector<7x256xf32>
    %c0_98 = arith.constant 0 : index
    %c5_99 = arith.constant 5 : index
    %146 = vector.load %arg2[%c0_98, %c5_99] : memref<16x8xf32, #tpu.memory_space<vmem>>, vector<7x1xf32>
    %c8_100 = arith.constant 8 : index
    %c5_101 = arith.constant 5 : index
    %147 = vector.load %arg2[%c8_100, %c5_101] : memref<16x8xf32, #tpu.memory_space<vmem>>, vector<7x1xf32>
    %c0_102 = arith.constant 0 : index
    %c5_103 = arith.constant 5 : index
    %148 = vector.load %arg5[%c0_102, %c5_103] : memref<16x262xf32, #tpu.memory_space<vmem>>, vector<7x256xf32>
    %c8_104 = arith.constant 8 : index
    %c5_105 = arith.constant 5 : index
    %149 = vector.load %arg5[%c8_104, %c5_105] : memref<16x262xf32, #tpu.memory_space<vmem>>, vector<7x256xf32>
    %150 = vector.broadcast %146 : vector<7x1xf32> to vector<7x256xf32>
    %151 = arith.mulf %150, %148 : vector<7x256xf32>
    %152 = vector.broadcast %147 : vector<7x1xf32> to vector<7x256xf32>
    %153 = arith.mulf %152, %149 : vector<7x256xf32>
    %154 = arith.addf %151, %153 : vector<7x256xf32>
    %c-2_i32 = arith.constant -2 : i32
    %155 = vector.broadcast %c-2_i32 : i32 to vector<1x256xi32>
    %156 = arith.cmpi sge, %58, %155 : vector<1x256xi32>
    %c14_i32 = arith.constant 14 : i32
    %157 = vector.broadcast %c14_i32 : i32 to vector<1x256xi32>
    %158 = arith.cmpi slt, %58, %157 : vector<1x256xi32>
    %159 = arith.andi %156, %158 : vector<1x256xi1>
    %cst_106 = arith.constant 0.000000e+00 : f32
    %160 = vector.shape_cast %159 : vector<1x256xi1> to vector<1x256xi1>
    %161 = vector.broadcast %160 : vector<1x256xi1> to vector<7x256xi1>
    %162 = vector.broadcast %cst_106 : f32 to vector<7x256xf32>
    %163 = arith.select %161, %154, %162 : vector<7x256xi1>, vector<7x256xf32>
    %164 = arith.addf %145, %163 : vector<7x256xf32>
    %c0_107 = arith.constant 0 : index
    %c6_108 = arith.constant 6 : index
    %165 = vector.load %arg2[%c0_107, %c6_108] : memref<16x8xf32, #tpu.memory_space<vmem>>, vector<7x1xf32>
    %c8_109 = arith.constant 8 : index
    %c6_110 = arith.constant 6 : index
    %166 = vector.load %arg2[%c8_109, %c6_110] : memref<16x8xf32, #tpu.memory_space<vmem>>, vector<7x1xf32>
    %c0_111 = arith.constant 0 : index
    %c6_112 = arith.constant 6 : index
    %167 = vector.load %arg5[%c0_111, %c6_112] : memref<16x262xf32, #tpu.memory_space<vmem>>, vector<7x256xf32>
    %c8_113 = arith.constant 8 : index
    %c6_114 = arith.constant 6 : index
    %168 = vector.load %arg5[%c8_113, %c6_114] : memref<16x262xf32, #tpu.memory_space<vmem>>, vector<7x256xf32>
    %169 = vector.broadcast %165 : vector<7x1xf32> to vector<7x256xf32>
    %170 = arith.mulf %169, %167 : vector<7x256xf32>
    %171 = vector.broadcast %166 : vector<7x1xf32> to vector<7x256xf32>
    %172 = arith.mulf %171, %168 : vector<7x256xf32>
    %173 = arith.addf %170, %172 : vector<7x256xf32>
    %c-3_i32 = arith.constant -3 : i32
    %174 = vector.broadcast %c-3_i32 : i32 to vector<1x256xi32>
    %175 = arith.cmpi sge, %58, %174 : vector<1x256xi32>
    %c13_i32 = arith.constant 13 : i32
    %176 = vector.broadcast %c13_i32 : i32 to vector<1x256xi32>
    %177 = arith.cmpi slt, %58, %176 : vector<1x256xi32>
    %178 = arith.andi %175, %177 : vector<1x256xi1>
    %cst_115 = arith.constant 0.000000e+00 : f32
    %179 = vector.shape_cast %178 : vector<1x256xi1> to vector<1x256xi1>
    %180 = vector.broadcast %179 : vector<1x256xi1> to vector<7x256xi1>
    %181 = vector.broadcast %cst_115 : f32 to vector<7x256xf32>
    %182 = arith.select %180, %173, %181 : vector<7x256xi1>, vector<7x256xf32>
    %183 = arith.addf %164, %182 : vector<7x256xf32>
    %cst_116 = arith.constant dense<0.000000e+00> : vector<256xf32>
    %184 = vector.multi_reduction <add>, %183, %cst_116 [0] : vector<7x256xf32> to vector<256xf32>
    %185 = vector.shape_cast %184 : vector<256xf32> to vector<1x256xf32>
    %186 = arith.negf %185 : vector<1x256xf32>
    %187 = math.exp %186 : vector<1x256xf32>
    %cst_117 = arith.constant 1.000000e+00 : f32
    %188 = vector.broadcast %cst_117 : f32 to vector<1x256xf32>
    %189 = arith.addf %188, %187 : vector<1x256xf32>
    %190 = arith.divf %188, %189 : vector<1x256xf32>
    %191 = vector.shape_cast %190 : vector<1x256xf32> to vector<1x256xf32>
    %192 = vector.broadcast %191 : vector<1x256xf32> to vector<8x256xf32>
    %c0_118 = arith.constant 0 : index
    %c0_119 = arith.constant 0 : index
    %193 = vector.load %arg6[%c0_118, %c0_119] : memref<8x256xf32, #tpu.memory_space<vmem>>, vector<8x256xf32>
    tpu.vector_store %arg6[%c0_118, %c0_119], %192 {strides = array<i32>} : memref<8x256xf32, #tpu.memory_space<vmem>>, vector<8x256xf32>,
    %c0_120 = arith.constant 0 : index
    %c0_121 = arith.constant 0 : index
    %c0_122 = arith.constant 0 : index
    %194 = vector.load %arg1[%c0_120, %c0_121, %c0_122] : memref<1x4x256xf32, #tpu.memory_space<vmem>>, vector<1x4x256xf32>
    %195 = vector.shape_cast %194 : vector<1x4x256xf32> to vector<4x256xf32>
    %c0_123 = arith.constant 0 : index
    %c0_124 = arith.constant 0 : index
    %196 = vector.load %arg6[%c0_123, %c0_124] : memref<8x256xf32, #tpu.memory_space<vmem>>, vector<4x256xf32>
    %197 = arith.mulf %195, %196 : vector<4x256xf32>
    %c0_125 = arith.constant 0 : index
    %c0_126 = arith.constant 0 : index
    %c0_127 = arith.constant 0 : index
    %198 = vector.load %arg3[%c0_125, %c0_126, %c0_127] : memref<1x4x256xf32, #tpu.memory_space<vmem>>, vector<1x4x256xf32>
    %199 = vector.shape_cast %198 : vector<1x4x256xf32> to vector<4x256xf32>
    %200 = vector.shape_cast %197 : vector<4x256xf32> to vector<1x4x256xf32>
    tpu.vector_store %arg3[%c0_125, %c0_126, %c0_127], %200 {strides = array<i32>} : memref<1x4x256xf32, #tpu.memory_space<vmem>>, vector<1x4x256xf32>,
    return
  }
  func.func @transform_0(%arg0: i32) -> (i32, i32, i32) {
    %c0_i32 = arith.constant 0 : i32
    %c0_i32_0 = arith.constant 0 : i32
    %c0_i32_1 = arith.constant 0 : i32
    return %arg0, %c0_i32, %c0_i32_0 : i32, i32, i32
  }
  func.func @transform_1(%arg0: i32) -> (i32, i32) {
    %c0_i32 = arith.constant 0 : i32
    %c0_i32_0 = arith.constant 0 : i32
    %c0_i32_1 = arith.constant 0 : i32
    return %c0_i32, %c0_i32_0 : i32, i32
  }
  func.func @transform_2(%arg0: i32) -> (i32, i32, i32) {
    %c0_i32 = arith.constant 0 : i32
    %c0_i32_0 = arith.constant 0 : i32
    %c0_i32_1 = arith.constant 0 : i32
    return %arg0, %c0_i32, %c0_i32_0 : i32, i32, i32
  }
}

</mosaic_0001>

<llo_original>
// kernel: tpu_custom_call.1
$region0: #{tpu_custom_call.1}
  #allocation0 [shape = 'u32[]', space=smem, size = 0x4, offset = 0x4, fixed_abs, tag = 'smem constant byte address 0x4 - core index']
  #allocation1 [shape = 'u32[144,128]{1,0:T(1,128)}', space=vmem, size = 0x12000, scoped, tag = 'internal scratch']
  #allocation2 [shape = 'f32[2,358]{1,0:T(2,128)}', space=vmem, size = 0xc00, scoped, tag = 'scratch operand']
  #allocation3 [shape = 'f32[16,262]{1,0:T(8,128)}', space=vmem, size = 0x6000, scoped, tag = 'scratch operand']
  #allocation4 [shape = 'f32[8,256]{1,0:T(8,128)}', space=vmem, size = 0x2000, scoped, tag = 'scratch operand']
  %s0 = inlined_call_operand.vmem [shape: f32[2,4,256], index: 0, kind: input, shape index: {}]
  %s1 = inlined_call_operand.vmem [shape: f32[16,8], index: 1, kind: input, shape index: {}]
  %s2 = inlined_call_operand.hbm [shape: f32[2,4,256], index: 2, kind: output, shape index: {}]
  %s3 = sld [smem:[#allocation0]]
  $region41: #{tpu_custom_call.1} parent=0
    _
  %s5 = ssub.s32 1, %s3
  %s6 = scalar_select 0, %s5, %s3
  $region1: #{tpu_custom_call.1} parent=0
    #allocation5 [shape = 'u8[8192]{0}', space=vmem, size = 0x2000, scoped, tag = 'output window, operand 0']
    #allocation6 [shape = 's32[2]{0}', space=sflag, size = 0x8, scoped, tag = 'scoped memory for tpu_custom_call.1']
    %7 = vsyncpa [#allocation6], 0
    %s8 = scalar_lea.sflag [#allocation6], 1
    %9 = vsyncpa %s8, 0
    loop: start=0, step=1, limit=4
    $region2: #{tpu_custom_call.1} parent=1 // loop_pre_header
      _
    $region3: #{tpu_custom_call.1} parent=1 // loop_header
      %s11 = sphi 0, %s15
      %p12 = scmp.ge.s32.totalorder %s11, 4
      %s21 = sphi 0, %s23
      %s24 = sphi 0, %s21
      %s25 = sphi 0, %s24
      %s41 = sphi 0, %s25
      %s45 = sphi 0, %s45
      %s47 = sphi 0, %s45
      %s48 = sphi 0, %s47
      %s62 = sphi 0, %s48
      %s68 = sphi 0, %s70
      %s71 = sphi 0, %s68
      %s72 = sphi 0, %s71
      %s88 = sphi 0, %s72
    $region4: #{tpu_custom_call.1} parent=1 // loop_header_branch
      %14 = sbr.rel (%p12) target = $region8
    $region5: #{tpu_custom_call.1} parent=1 // loop_body
      %s16 = ssub.s32 %s11, 1
      %s17 = ssub.s32 %s11, 2
      %s18 = sadd.s32 %s11, 1
      %s19 = ssub.s32 %s11, %s18
      %p20 = scmp.eq.s32.totalorder %s19, 0
      %s22 = sadd.s32 %s21, 1
      %s23 = scalar_select %p20, %s21, %s22
      %p26 = pneg %p20
      %p27 = scmp.eq.s32.totalorder %s11, 1
      %p28 = por %p26, %p27
      %p29 = scmp.ne.s32.totalorder %s21, %s24
      %p30 = scmp.eq.s32.totalorder %s11, 0
      %p31 = por %p29, %p30
      %p32 = scmp.ne.s32.totalorder %s21, %s24
      %p33 = scmp.eq.s32.totalorder %s16, 1
      %p34 = por %p32, %p33
      %p35 = scmp.ne.s32.totalorder %s24, %s25
      %p36 = scmp.eq.s32.totalorder %s16, 0
      %p37 = por %p35, %p36
      %p38 = scmp.ne.s32.totalorder %s24, %s25
      %p39 = scmp.eq.s32.totalorder %s17, 1
      %p40 = por %p38, %p39
      %p42 = scmp.ne.s32.totalorder %s25, %s41
      %p43 = scmp.eq.s32.totalorder %s17, 0
      %p44 = por %p42, %p43
      %s46 = sadd.s32 %s45, 1
      %p49 = scmp.eq.s32.totalorder %s11, 1
      %p50 = scmp.ne.s32.totalorder %s45, %s47
      %p51 = scmp.eq.s32.totalorder %s11, 0
      %p52 = por %p50, %p51
      %p53 = scmp.ne.s32.totalorder %s45, %s47
      %p54 = scmp.eq.s32.totalorder %s16, 1
      %p55 = por %p53, %p54
      %p56 = scmp.ne.s32.totalorder %s47, %s48
      %p57 = scmp.eq.s32.totalorder %s16, 0
      %p58 = por %p56, %p57
      %p59 = scmp.ne.s32.totalorder %s47, %s48
      %p60 = scmp.eq.s32.totalorder %s17, 1
      %p61 = por %p59, %p60
      %p63 = scmp.ne.s32.totalorder %s48, %s62
      %p64 = scmp.eq.s32.totalorder %s17, 0
      %p65 = por %p63, %p64
      %s66 = ssub.s32 %s11, %s18
      %p67 = scmp.eq.s32.totalorder %s66, 0
      %s69 = sadd.s32 %s68, 1
      %s70 = scalar_select %p67, %s68, %s69
      %p73 = pneg %p67
      %p74 = scmp.eq.s32.totalorder %s11, 1
      %p75 = por %p73, %p74
      %p76 = scmp.ne.s32.totalorder %s68, %s71
      %p77 = scmp.eq.s32.totalorder %s11, 0
      %p78 = por %p76, %p77
      %p79 = scmp.ne.s32.totalorder %s68, %s71
      %p80 = scmp.eq.s32.totalorder %s16, 1
      %p81 = por %p79, %p80
      %p82 = scmp.ne.s32.totalorder %s71, %s72
      %p83 = scmp.eq.s32.totalorder %s16, 0
      %p84 = por %p82, %p83
      %p85 = scmp.ne.s32.totalorder %s71, %s72
      %p86 = scmp.eq.s32.totalorder %s17, 1
      %p87 = por %p85, %p86
      %p89 = scmp.ne.s32.totalorder %s72, %s88
      %p90 = scmp.eq.s32.totalorder %s17, 0
      %p91 = por %p89, %p90
      %p92 = scmp.le.s32.totalorder 1, %s11
      %p93 = scmp.lt.s32.totalorder %s11, 3
      %p94 = pnand %p92, %p93
      %p95 = pneg %p94
      // Predicated region
      $region9: #{tpu_custom_call.1} parent=5 // pred_check
        _
      $region10: #{tpu_custom_call.1} parent=5 // pred_check_branch
        %97 = sbr.rel (%p94) target = $region12
      $region11: #{tpu_custom_call.1} parent=5 // pred_region
        %s98 = ssub.s32 %s11, 1
        // Predicated region
        $region13: #{tpu_custom_call.1} parent=11 // pred_check
          %p99 = pneg %p58
        $region14: #{tpu_custom_call.1} parent=11 // pred_check_branch
          %101 = sbr.rel (%p99) target = $region16
        $region15: #{tpu_custom_call.1} parent=11 // pred_region
          _
        $region16: #{tpu_custom_call.1} parent=11 // pred_fallthru
          _
      $region12: #{tpu_custom_call.1} parent=5 // pred_fallthru
        _
      %p102 = scmp.lt.s32.totalorder %s11, 2
      // Predicated region
      $region17: #{tpu_custom_call.1} parent=5 // pred_check
        %p103 = pneg %p102
      $region18: #{tpu_custom_call.1} parent=5 // pred_check_branch
        %105 = sbr.rel (%p103) target = $region20
      $region19: #{tpu_custom_call.1} parent=5 // pred_region
        // Predicated region
        $region21: #{tpu_custom_call.1} parent=19 // pred_check
          %p106 = pneg %p31
        $region22: #{tpu_custom_call.1} parent=19 // pred_check_branch
          %108 = sbr.rel (%p106) target = $region24
        $region23: #{tpu_custom_call.1} parent=19 // pred_region
          %p109 = scmp.lt.s32.totalorder %s11, 1
          %s110 = scalar_select %p109, %s11, 1
          %s111 = smul.addr %s110, 2
          %s112 = smul.addr %s111, 4
          %s113 = scalar_lea.vmem %s0, %s112
        $region24: #{tpu_custom_call.1} parent=19 // pred_fallthru
          _
      $region20: #{tpu_custom_call.1} parent=5 // pred_fallthru
        _
      %p114 = scmp.le.s32.totalorder 1, %s11
      %p115 = scmp.lt.s32.totalorder %s11, 3
      %p116 = pnand %p114, %p115
      %p117 = pneg %p116
      // Predicated region
      $region25: #{tpu_custom_call.1} parent=5 // pred_check
        _
      $region26: #{tpu_custom_call.1} parent=5 // pred_check_branch
        %119 = sbr.rel (%p116) target = $region28
      $region27: #{tpu_custom_call.1} parent=5 // pred_region
        %s120 = ssub.s32 %s11, 1
        %p121 = scmp.lt.s32.totalorder %s16, 1
        %s122 = scalar_select %p121, %s16, 1
        %s123 = smul.addr %s122, 2
        %s124 = smul.addr %s123, 4
        %s125 = scalar_lea.vmem %s0, %s124
        %p126 = pneg %p37
        %p127 = pneg %p34
        %p128 = pneg %p58
        %p129 = pneg %p55
        %p130 = pneg %p84
        %p131 = pneg %p81
        %s132 = sand.u32 %s71, 1
        %s133 = scalar_lea.sflag [#allocation6], %s132
        %s134 = sand.u32 %s71, 1
        %s135 = smul.addr %s134, 8
        %s136 = scalar_lea.vmem [#allocation5], %s135
        %p137 = scmp.lt.s32.totalorder %s16, 1
        %s138 = scalar_select %p137, %s16, 1
        %s139 = smul.addr %s138, 2
        %s140 = smul.addr %s139, 4
        %s141 = scalar_lea.vmem %s0, %s140
        %vm142 = vcmask 410624
        %143 = vst.msk [vmem:[#allocation2] sm:$0x3] %vm142, 0.0
        %vm144 = vcmask 828824
        %145 = vst.msk [vmem:[#allocation2 + $0x4] sm:$0x3] %vm144, 0.0
        %v146 = vld [vmem:[%s141] sm:$0xff]
        %v148 = vcombine.high %v146, %v146
        %vm150 = vcmask 1043456
        %v151 = vsel %vm150, %v146, -inf
        %v152 = vrot.slane %v151, 4
        %v153 = vmax.f32 %v151, %v152
        %v154 = vrot.slane %v153, 2
        %v155 = vmax.f32 %v153, %v154
        %v156 = vrot.slane %v155, 1
        %v157 = vmax.f32 %v155, %v156
        %v158 = vsel %vm150, %v148, -inf
        %v159 = vrot.slane %v158, 4
        %v160 = vmax.f32 %v158, %v159
        %v161 = vrot.slane %v160, 2
        %v162 = vmax.f32 %v160, %v161
        %v163 = vrot.slane %v162, 1
        %v164 = vmax.f32 %v162, %v163
        %v165 = vsel %vm150, %v146, 0.0
        %v166 = vrot.slane %v165, 4
        %v167 = vadd.f32 %v165, %v166
        %v168 = vrot.slane %v167, 2
        %v169 = vadd.f32 %v167, %v168
        %v170 = vrot.slane %v169, 1
        %v171 = vadd.f32 %v169, %v170
        %v172 = vsel %vm150, %v148, 0.0
        %v173 = vrot.slane %v172, 4
        %v174 = vadd.f32 %v172, %v173
        %v175 = vrot.slane %v174, 2
        %v176 = vadd.f32 %v174, %v175
        %v177 = vrot.slane %v176, 1
        %v178 = vadd.f32 %v176, %v177
        %v181 = vcombine.low %v171, %v178
        %v183 = vunpack.c.l.s4 1966171168
        %v184 = vunpack.c.0.s8 %v183
        %v185 = vlaneseq
        %v186 = vshrl.u32 %v185, 7
        %v187 = vsub.s32 %v184, %v186
        %v188 = vrot.slane %v181, %v187
        %v190 = vunpack.c.l.s4 1966171168
        %v191 = vunpack.c.0.s8 %v190
        %v192 = vlaneseq
        %v193 = vshrl.u32 %v192, 7
        %v194 = vsub.s32 %v191, %v193
        %v195 = vrot.slane %v188, %v194
        %196 = vrot.lane.b32.xlu0 %v195, 51
        %v197 = vpop.permute.xlu0 %196
        %v198 = vrot.slane %v197, 7
        %vm199 = vcmask 416768
        %v200 = vsel %vm199, %v198, %v197
        %v202 = vlaneseq
        %vm203 = vcmp.ge.s32.totalorder %v202, 51
        %vm204 = vcmp.lt.s32.totalorder %v202, 307
        %vm205 = vmand %vm203, %vm204
        %206 = vst.msk [vmem:[#allocation2] ss:$2 sm:$0x7] %vm205, %v200
        %v209 = vcombine.low %v157, %v164
        %v211 = vunpack.c.l.s4 1966171168
        %v212 = vunpack.c.0.s8 %v211
        %v213 = vlaneseq
        %v214 = vshrl.u32 %v213, 7
        %v215 = vsub.s32 %v212, %v214
        %v216 = vrot.slane %v209, %v215
        %v218 = vunpack.c.l.s4 1966171168
        %v219 = vunpack.c.0.s8 %v218
        %v220 = vlaneseq
        %v221 = vshrl.u32 %v220, 7
        %v222 = vsub.s32 %v219, %v221
        %v223 = vrot.slane %v216, %v222
        %224 = vrot.lane.b32.xlu0 %v223, 51
        %v225 = vpop.permute.xlu0 %224
        %v226 = vrot.slane %v225, 7
        %v227 = vsel %vm199, %v226, %v225
        %s229 = scalar_lea.vmem [#allocation2], 1
        %230 = vst.msk [vmem:[%s229] ss:$2 sm:$0x7] %vm205, %v227
        %v231 = vld [vmem:[#allocation2] ss:$2 sm:$0x7]
        %vm232 = vcmp.ge.s32.totalorder %v202, 0
        %vm233 = vcmp.lt.s32.totalorder %v202, 262
        %vm234 = vmand %vm232, %vm233
        %235 = vst.msk [vmem:[#allocation3] ss:$8 sm:$0x7] %vm234, %v231
        %236 = vst.msk [vmem:[#allocation3] ss:$8 sm:$0x0] %vm234, %v231
        %v237 = vld [vmem:[#allocation2] ss:$2 sm:$0x7]
        %239 = vrot.lane.b32.xlu0 %v237, 112
        %v240 = vpop.permute.xlu0 %239
        %v241 = vrot.slane %v240, 1
        %vm242 = vcmask 916480
        %v243 = vsel %vm242, %v240, %v241
        %s245 = scalar_lea.vmem [#allocation3], 1
        %246 = vst.msk [vmem:[%s245] ss:$8 sm:$0x7] %vm234, %v243
        %247 = vst.msk [vmem:[%s245] ss:$8 sm:$0x0] %vm234, %v243
        %v248 = vld [vmem:[#allocation2] ss:$2 sm:$0x7]
        %250 = vrot.lane.b32.xlu0 %v248, 96
        %v251 = vpop.permute.xlu0 %250
        %v252 = vrot.slane %v251, 1
        %vm253 = vcmask 785408
        %v254 = vsel %vm253, %v251, %v252
        %s256 = scalar_lea.vmem [#allocation3], 2
        %257 = vst.msk [vmem:[%s256] ss:$8 sm:$0x7] %vm234, %v254
        %258 = vst.msk [vmem:[%s256] ss:$8 sm:$0x0] %vm234, %v254
        %v259 = vld [vmem:[#allocation2] ss:$2 sm:$0x7]
        %261 = vrot.lane.b32.xlu0 %v259, 80
        %v262 = vpop.permute.xlu0 %261
        %v263 = vrot.slane %v262, 1
        %vm264 = vcmask 654336
        %v265 = vsel %vm264, %v262, %v263
        %s267 = scalar_lea.vmem [#allocation3], 3
        %268 = vst.msk [vmem:[%s267] ss:$8 sm:$0x7] %vm234, %v265
        %269 = vst.msk [vmem:[%s267] ss:$8 sm:$0x0] %vm234, %v265
        %v270 = vld [vmem:[#allocation2] ss:$2 sm:$0x7]
        %272 = vrot.lane.b32.xlu0 %v270, 64
        %v273 = vpop.permute.xlu0 %272
        %v274 = vrot.slane %v273, 1
        %vm275 = vcmask 523264
        %v276 = vsel %vm275, %v273, %v274
        %s278 = scalar_lea.vmem [#allocation3], 4
        %279 = vst.msk [vmem:[%s278] ss:$8 sm:$0x7] %vm234, %v276
        %280 = vst.msk [vmem:[%s278] ss:$8 sm:$0x0] %vm234, %v276
        %v281 = vld [vmem:[#allocation2] ss:$2 sm:$0x7]
        %283 = vrot.lane.b32.xlu0 %v281, 48
        %v284 = vpop.permute.xlu0 %283
        %v285 = vrot.slane %v284, 1
        %vm286 = vcmask 392192
        %v287 = vsel %vm286, %v284, %v285
        %s289 = scalar_lea.vmem [#allocation3], 5
        %290 = vst.msk [vmem:[%s289] ss:$8 sm:$0x7] %vm234, %v287
        %291 = vst.msk [vmem:[%s289] ss:$8 sm:$0x0] %vm234, %v287
        %v292 = vld [vmem:[#allocation2] ss:$2 sm:$0x7]
        %294 = vrot.lane.b32.xlu0 %v292, 32
        %v295 = vpop.permute.xlu0 %294
        %v296 = vrot.slane %v295, 1
        %vm297 = vcmask 261120
        %v298 = vsel %vm297, %v295, %v296
        %s300 = scalar_lea.vmem [#allocation3], 6
        %301 = vst.msk [vmem:[%s300] ss:$8 sm:$0x7] %vm234, %v298
        %302 = vst.msk [vmem:[%s300] ss:$8 sm:$0x0] %vm234, %v298
        %v303 = vld [vmem:[%s229] ss:$2 sm:$0x7]
        %s304 = scalar_lea.vmem [#allocation3], 24
        %305 = vst.msk [vmem:[%s304] ss:$8 sm:$0x7] %vm234, %v303
        %306 = vst.msk [vmem:[%s304] ss:$8 sm:$0x0] %vm234, %v303
        %v307 = vld [vmem:[%s229] ss:$2 sm:$0x7]
        %309 = vrot.lane.b32.xlu0 %v307, 112
        %v310 = vpop.permute.xlu0 %309
        %v311 = vrot.slane %v310, 1
        %v312 = vsel %vm242, %v310, %v311
        %s314 = scalar_lea.vmem [#allocation3], 25
        %315 = vst.msk [vmem:[%s314] ss:$8 sm:$0x7] %vm234, %v312
        %316 = vst.msk [vmem:[%s314] ss:$8 sm:$0x0] %vm234, %v312
        %v317 = vld [vmem:[%s229] ss:$2 sm:$0x7]
        %319 = vrot.lane.b32.xlu0 %v317, 96
        %v320 = vpop.permute.xlu0 %319
        %v321 = vrot.slane %v320, 1
        %v322 = vsel %vm253, %v320, %v321
        %s324 = scalar_lea.vmem [#allocation3], 26
        %325 = vst.msk [vmem:[%s324] ss:$8 sm:$0x7] %vm234, %v322
        %326 = vst.msk [vmem:[%s324] ss:$8 sm:$0x0] %vm234, %v322
        %v327 = vld [vmem:[%s229] ss:$2 sm:$0x7]
        %329 = vrot.lane.b32.xlu0 %v327, 80
        %v330 = vpop.permute.xlu0 %329
        %v331 = vrot.slane %v330, 1
        %v332 = vsel %vm264, %v330, %v331
        %s334 = scalar_lea.vmem [#allocation3], 27
        %335 = vst.msk [vmem:[%s334] ss:$8 sm:$0x7] %vm234, %v332
        %336 = vst.msk [vmem:[%s334] ss:$8 sm:$0x0] %vm234, %v332
        %v337 = vld [vmem:[%s229] ss:$2 sm:$0x7]
        %339 = vrot.lane.b32.xlu0 %v337, 64
        %v340 = vpop.permute.xlu0 %339
        %v341 = vrot.slane %v340, 1
        %v342 = vsel %vm275, %v340, %v341
        %s344 = scalar_lea.vmem [#allocation3], 28
        %345 = vst.msk [vmem:[%s344] ss:$8 sm:$0x7] %vm234, %v342
        %346 = vst.msk [vmem:[%s344] ss:$8 sm:$0x0] %vm234, %v342
        %v347 = vld [vmem:[%s229] ss:$2 sm:$0x7]
        %349 = vrot.lane.b32.xlu0 %v347, 48
        %v350 = vpop.permute.xlu0 %349
        %v351 = vrot.slane %v350, 1
        %v352 = vsel %vm286, %v350, %v351
        %s354 = scalar_lea.vmem [#allocation3], 29
        %355 = vst.msk [vmem:[%s354] ss:$8 sm:$0x7] %vm234, %v352
        %356 = vst.msk [vmem:[%s354] ss:$8 sm:$0x0] %vm234, %v352
        %v357 = vld [vmem:[%s229] ss:$2 sm:$0x7]
        %359 = vrot.lane.b32.xlu0 %v357, 32
        %v360 = vpop.permute.xlu0 %359
        %v361 = vrot.slane %v360, 1
        %v362 = vsel %vm297, %v360, %v361
        %s364 = scalar_lea.vmem [#allocation3], 30
        %365 = vst.msk [vmem:[%s364] ss:$8 sm:$0x7] %vm234, %v362
        %366 = vst.msk [vmem:[%s364] ss:$8 sm:$0x0] %vm234, %v362
        %v367 = vlaneseq
        %v368 = vand.u32 %v367, 127
        %v369 = vadd.s32 %v368, 128
        %vm370 = vcmp.lt.s32.totalorder %v368, 0
        %v371 = vsub.s32 0, %v368
        %v372 = vsel %vm370, %v371, %v368
        %v373 = vshrl.u32 %v372, 4
        %v374 = vand.u32 %v372, 15
        %v375 = vsub.s32 0, %v374
        %v376 = vsel %vm370, %v375, %v374
        %vm377 = vcmp.lt.s32.totalorder %v369, 0
        %v378 = vsub.s32 0, %v369
        %v379 = vsel %vm377, %v378, %v369
        %v380 = vshrl.u32 %v379, 4
        %v381 = vand.u32 %v379, 15
        %v382 = vsub.s32 0, %v381
        %v383 = vsel %vm377, %v382, %v381
        %vm384 = vcmp.ne.s32.totalorder %v376, 0
        %vm385 = vcmp.ne.s32.totalorder %v383, 0
        %vm386 = vcmp.lt.s32.totalorder %v376, 0
        %vm387 = vcmp.lt.s32.totalorder %v383, 0
        %vm388 = vmand %vm386, %vm384
        %vm389 = vmand %vm387, %vm385
        %v390 = vadd.s32 %v376, 16
        %v391 = vadd.s32 %v383, 16
        %v392 = vsel %vm388, %v390, %v376
        %v393 = vsel %vm389, %v391, %v383
        %v394 = vld [vmem:[%s1] sm:$0x7f]
        %v395 = vld [vmem:[%s1 + $0x8] sm:$0x7f]
        %v396 = vld [vmem:[#allocation3] sm:$0x7f]
        %v397 = vld [vmem:[#allocation3 + $0x8] sm:$0x7f]
        %v398 = vld [vmem:[#allocation3 + $0x18] sm:$0x7f]
        %v399 = vld [vmem:[#allocation3 + $0x20] sm:$0x7f]
        %401 = vset.pattern.permute.xlu0 0
        %402 = vperm.xlu0 %401, %v394
        %v403 = vpop.permute.xlu0 %402
        %v405 = vmul.f32 %v403, %v396
        %v406 = vmul.f32 %v403, %v397
        %408 = vset.pattern.permute.xlu0 0
        %409 = vperm.xlu0 %408, %v395
        %v410 = vpop.permute.xlu0 %409
        %v412 = vmul.f32 %v410, %v398
        %v413 = vmul.f32 %v410, %v399
        %v414 = vadd.f32 %v405, %v412
        %v415 = vadd.f32 %v406, %v413
        %vm416 = vcmp.ge.s32.totalorder %v392, 3
        %vm417 = vcmp.ge.s32.totalorder %v393, 3
        %vm418 = vcmp.lt.s32.totalorder %v392, 19
        %vm419 = vcmp.lt.s32.totalorder %v393, 19
        %vm420 = vmand %vm416, %vm418
        %vm421 = vmand %vm417, %vm419
        %v422 = vsel %vm420, 1, 0
        %v423 = vsel %vm421, 1, 0
        %vm424 = vcmp.eq.s32.totalorder %v422, 1
        %vm425 = vcmp.eq.s32.totalorder %v423, 1
        %v426 = vsel %vm424, %v414, 0.0
        %v427 = vsel %vm425, %v415, 0.0
        %v428 = vadd.f32 %v426, 0.0
        %v429 = vadd.f32 %v427, 0.0
        %v430 = vld [vmem:[#allocation3] sm:$0x7f]
        %v431 = vld [vmem:[#allocation3 + $0x8] sm:$0x7f]
        %v432 = vld [vmem:[#allocation3 + $0x10] sm:$0x7f]
        %v433 = vld [vmem:[#allocation3 + $0x18] sm:$0x7f]
        %v434 = vld [vmem:[#allocation3 + $0x20] sm:$0x7f]
        %v435 = vld [vmem:[#allocation3 + $0x28] sm:$0x7f]
        %436 = vset.pattern.permute.xlu0 1
        %437 = vperm.xlu0 %436, %v394
        %v438 = vpop.permute.xlu0 %437
        %v440 = vmul.f32 %v438, %v430
        %v441 = vmul.f32 %v438, %v431
        %v442 = vmul.f32 %v438, %v432
        %443 = vset.pattern.permute.xlu0 1
        %444 = vperm.xlu0 %443, %v395
        %v445 = vpop.permute.xlu0 %444
        %v447 = vmul.f32 %v445, %v433
        %v448 = vmul.f32 %v445, %v434
        %v449 = vmul.f32 %v445, %v435
        %v450 = vadd.f32 %v440, %v447
        %v451 = vadd.f32 %v441, %v448
        %v452 = vadd.f32 %v442, %v449
        %vm453 = vcmp.ge.s32.totalorder %v392, 2
        %vm454 = vcmp.ge.s32.totalorder %v393, 2
        %vm455 = vcmp.lt.s32.totalorder %v392, 18
        %vm456 = vcmp.lt.s32.totalorder %v393, 18
        %vm457 = vmand %vm453, %vm455
        %vm458 = vmand %vm454, %vm456
        %v459 = vsel %vm457, 1, 0
        %v460 = vsel %vm458, 1, 0
        %vm461 = vcmp.eq.s32.totalorder %v459, 1
        %vm462 = vcmp.eq.s32.totalorder %v460, 1
        %466 = vrot.lane.b32.xlu0 %v450, 127
        %v467 = vpop.permute.xlu0 %466
        %468 = vrot.lane.b32.xlu0 %v451, 127
        %v469 = vpop.permute.xlu0 %468
        %470 = vrot.lane.b32.xlu0 %v452, 127
        %v471 = vpop.permute.xlu0 %470
        %vm472 = vcmask 1039360
        %v473 = vsel %vm472, %v467, %v469
        %v474 = vsel %vm472, %v469, %v471
        %v477 = vsel %vm461, %v473, 0.0
        %v478 = vsel %vm462, %v474, 0.0
        %v479 = vadd.f32 %v428, %v477
        %v480 = vadd.f32 %v429, %v478
        %481 = vset.pattern.permute.xlu0 2
        %482 = vperm.xlu0 %481, %v394
        %v483 = vpop.permute.xlu0 %482
        %v485 = vmul.f32 %v483, %v430
        %v486 = vmul.f32 %v483, %v431
        %v487 = vmul.f32 %v483, %v432
        %488 = vset.pattern.permute.xlu0 2
        %489 = vperm.xlu0 %488, %v395
        %v490 = vpop.permute.xlu0 %489
        %v492 = vmul.f32 %v490, %v433
        %v493 = vmul.f32 %v490, %v434
        %v494 = vmul.f32 %v490, %v435
        %v495 = vadd.f32 %v485, %v492
        %v496 = vadd.f32 %v486, %v493
        %v497 = vadd.f32 %v487, %v494
        %vm498 = vcmp.ge.s32.totalorder %v392, 1
        %vm499 = vcmp.ge.s32.totalorder %v393, 1
        %vm500 = vcmp.lt.s32.totalorder %v392, 17
        %vm501 = vcmp.lt.s32.totalorder %v393, 17
        %vm502 = vmand %vm498, %vm500
        %vm503 = vmand %vm499, %vm501
        %v504 = vsel %vm502, 1, 0
        %v505 = vsel %vm503, 1, 0
        %vm506 = vcmp.eq.s32.totalorder %v504, 1
        %vm507 = vcmp.eq.s32.totalorder %v505, 1
        %511 = vrot.lane.b32.xlu0 %v495, 126
        %v512 = vpop.permute.xlu0 %511
        %513 = vrot.lane.b32.xlu0 %v496, 126
        %v514 = vpop.permute.xlu0 %513
        %515 = vrot.lane.b32.xlu0 %v497, 126
        %v516 = vpop.permute.xlu0 %515
        %vm517 = vcmask 1031168
        %v518 = vsel %vm517, %v512, %v514
        %v519 = vsel %vm517, %v514, %v516
        %v522 = vsel %vm506, %v518, 0.0
        %v523 = vsel %vm507, %v519, 0.0
        %v524 = vadd.f32 %v479, %v522
        %v525 = vadd.f32 %v480, %v523
        %526 = vset.pattern.permute.xlu0 3
        %527 = vperm.xlu0 %526, %v394
        %v528 = vpop.permute.xlu0 %527
        %v530 = vmul.f32 %v528, %v430
        %v531 = vmul.f32 %v528, %v431
        %v532 = vmul.f32 %v528, %v432
        %533 = vset.pattern.permute.xlu0 3
        %534 = vperm.xlu0 %533, %v395
        %v535 = vpop.permute.xlu0 %534
        %v537 = vmul.f32 %v535, %v433
        %v538 = vmul.f32 %v535, %v434
        %v539 = vmul.f32 %v535, %v435
        %v540 = vadd.f32 %v530, %v537
        %v541 = vadd.f32 %v531, %v538
        %v542 = vadd.f32 %v532, %v539
        %546 = vrot.lane.b32.xlu0 %v540, 125
        %v547 = vpop.permute.xlu0 %546
        %548 = vrot.lane.b32.xlu0 %v541, 125
        %v549 = vpop.permute.xlu0 %548
        %550 = vrot.lane.b32.xlu0 %v542, 125
        %v551 = vpop.permute.xlu0 %550
        %vm552 = vcmask 1022976
        %v553 = vsel %vm552, %v547, %v549
        %v554 = vsel %vm552, %v549, %v551
        %v557 = vadd.f32 %v524, %v553
        %v558 = vadd.f32 %v525, %v554
        %559 = vset.pattern.permute.xlu0 4
        %560 = vperm.xlu0 %559, %v394
        %v561 = vpop.permute.xlu0 %560
        %v563 = vmul.f32 %v561, %v430
        %v564 = vmul.f32 %v561, %v431
        %v565 = vmul.f32 %v561, %v432
        %566 = vset.pattern.permute.xlu0 4
        %567 = vperm.xlu0 %566, %v395
        %v568 = vpop.permute.xlu0 %567
        %v570 = vmul.f32 %v568, %v433
        %v571 = vmul.f32 %v568, %v434
        %v572 = vmul.f32 %v568, %v435
        %v573 = vadd.f32 %v563, %v570
        %v574 = vadd.f32 %v564, %v571
        %v575 = vadd.f32 %v565, %v572
        %vm576 = vcmp.ge.s32.totalorder %v392, 4294967295
        %vm577 = vcmp.ge.s32.totalorder %v393, 4294967295
        %vm578 = vcmp.lt.s32.totalorder %v392, 15
        %vm579 = vcmp.lt.s32.totalorder %v393, 15
        %vm580 = vmand %vm576, %vm578
        %vm581 = vmand %vm577, %vm579
        %v582 = vsel %vm580, 1, 0
        %v583 = vsel %vm581, 1, 0
        %vm584 = vcmp.eq.s32.totalorder %v582, 1
        %vm585 = vcmp.eq.s32.totalorder %v583, 1
        %589 = vrot.lane.b32.xlu0 %v573, 124
        %v590 = vpop.permute.xlu0 %589
        %591 = vrot.lane.b32.xlu0 %v574, 124
        %v592 = vpop.permute.xlu0 %591
        %593 = vrot.lane.b32.xlu0 %v575, 124
        %v594 = vpop.permute.xlu0 %593
        %vm595 = vcmask 1014784
        %v596 = vsel %vm595, %v590, %v592
        %v597 = vsel %vm595, %v592, %v594
        %v600 = vsel %vm584, %v596, 0.0
        %v601 = vsel %vm585, %v597, 0.0
        %v602 = vadd.f32 %v557, %v600
        %v603 = vadd.f32 %v558, %v601
        %604 = vset.pattern.permute.xlu0 5
        %605 = vperm.xlu0 %604, %v394
        %v606 = vpop.permute.xlu0 %605
        %v608 = vmul.f32 %v606, %v430
        %v609 = vmul.f32 %v606, %v431
        %v610 = vmul.f32 %v606, %v432
        %611 = vset.pattern.permute.xlu0 5
        %612 = vperm.xlu0 %611, %v395
        %v613 = vpop.permute.xlu0 %612
        %v615 = vmul.f32 %v613, %v433
        %v616 = vmul.f32 %v613, %v434
        %v617 = vmul.f32 %v613, %v435
        %v618 = vadd.f32 %v608, %v615
        %v619 = vadd.f32 %v609, %v616
        %v620 = vadd.f32 %v610, %v617
        %vm621 = vcmp.ge.s32.totalorder %v392, 4294967294
        %vm622 = vcmp.ge.s32.totalorder %v393, 4294967294
        %vm623 = vcmp.lt.s32.totalorder %v392, 14
        %vm624 = vcmp.lt.s32.totalorder %v393, 14
        %vm625 = vmand %vm621, %vm623
        %vm626 = vmand %vm622, %vm624
        %v627 = vsel %vm625, 1, 0
        %v628 = vsel %vm626, 1, 0
        %vm629 = vcmp.eq.s32.totalorder %v627, 1
        %vm630 = vcmp.eq.s32.totalorder %v628, 1
        %634 = vrot.lane.b32.xlu0 %v618, 123
        %v635 = vpop.permute.xlu0 %634
        %636 = vrot.lane.b32.xlu0 %v619, 123
        %v637 = vpop.permute.xlu0 %636
        %638 = vrot.lane.b32.xlu0 %v620, 123
        %v639 = vpop.permute.xlu0 %638
        %vm640 = vcmask 1006592
        %v641 = vsel %vm640, %v635, %v637
        %v642 = vsel %vm640, %v637, %v639
        %v645 = vsel %vm629, %v641, 0.0
        %v646 = vsel %vm630, %v642, 0.0
        %v647 = vadd.f32 %v602, %v645
        %v648 = vadd.f32 %v603, %v646
        %649 = vset.pattern.permute.xlu0 6
        %650 = vperm.xlu0 %649, %v394
        %v651 = vpop.permute.xlu0 %650
        %v653 = vmul.f32 %v651, %v430
        %v654 = vmul.f32 %v651, %v431
        %v655 = vmul.f32 %v651, %v432
        %656 = vset.pattern.permute.xlu0 6
        %657 = vperm.xlu0 %656, %v395
        %v658 = vpop.permute.xlu0 %657
        %v660 = vmul.f32 %v658, %v433
        %v661 = vmul.f32 %v658, %v434
        %v662 = vmul.f32 %v658, %v435
        %v663 = vadd.f32 %v653, %v660
        %v664 = vadd.f32 %v654, %v661
        %v665 = vadd.f32 %v655, %v662
        %vm666 = vcmp.ge.s32.totalorder %v392, 4294967293
        %vm667 = vcmp.ge.s32.totalorder %v393, 4294967293
        %vm668 = vcmp.lt.s32.totalorder %v392, 13
        %vm669 = vcmp.lt.s32.totalorder %v393, 13
        %vm670 = vmand %vm666, %vm668
        %vm671 = vmand %vm667, %vm669
        %v672 = vsel %vm670, 1, 0
        %v673 = vsel %vm671, 1, 0
        %vm674 = vcmp.eq.s32.totalorder %v672, 1
        %vm675 = vcmp.eq.s32.totalorder %v673, 1
        %679 = vrot.lane.b32.xlu0 %v663, 122
        %v680 = vpop.permute.xlu0 %679
        %681 = vrot.lane.b32.xlu0 %v664, 122
        %v682 = vpop.permute.xlu0 %681
        %683 = vrot.lane.b32.xlu0 %v665, 122
        %v684 = vpop.permute.xlu0 %683
        %vm685 = vcmask 998400
        %v686 = vsel %vm685, %v680, %v682
        %v687 = vsel %vm685, %v682, %v684
        %v690 = vsel %vm674, %v686, 0.0
        %v691 = vsel %vm675, %v687, 0.0
        %v692 = vadd.f32 %v647, %v690
        %v693 = vadd.f32 %v648, %v691
        %vm694 = vcmask 1046528
        %v695 = vsel %vm694, %v692, 0.0
        %v696 = vrot.slane %v695, 4
        %v697 = vadd.f32 %v695, %v696
        %v698 = vrot.slane %v697, 2
        %v699 = vadd.f32 %v697, %v698
        %v700 = vrot.slane %v699, 1
        %v701 = vadd.f32 %v699, %v700
        %v702 = vsel %vm694, %v693, 0.0
        %v703 = vrot.slane %v702, 4
        %v704 = vadd.f32 %v702, %v703
        %v705 = vrot.slane %v704, 2
        %v706 = vadd.f32 %v704, %v705
        %v707 = vrot.slane %v706, 1
        %v708 = vadd.f32 %v706, %v707
        %v709 = vxor.u32 %v701, 2147483648
        %v710 = vxor.u32 %v708, 2147483648
        %v711 = vmul.f32 %v709, 1.442695
        %v712 = vpow.pop %v711
        %v713 = vmul.f32 %v710, 1.442695
        %v714 = vpow.pop %v713
        %v715 = vadd.f32 %v712, 1.0
        %v716 = vadd.f32 %v714, 1.0
        %v717 = vrcp.pop %v715
        %v718 = vmul.f32 1.0, %v717
        %v719 = vrcp.pop %v716
        %v720 = vmul.f32 1.0, %v719
        %721 = vst [vmem:[#allocation4] sm:$0xff] %v718
        %722 = vst [vmem:[#allocation4 + $0x8] sm:$0xff] %v720
        %v723 = vld [vmem:[%s141] sm:$0xff]
        %v724 = vld [vmem:[#allocation4] sm:$0xf]
        %v725 = vld [vmem:[#allocation4 + $0x8] sm:$0xf]
        %v728 = vcombine.low %v724, %v725
        %v730 = vmul.f32 %v723, %v728
        %731 = vst [vmem:[%s136] sm:$0xff] %v730
        %s732 = sand.u32 %s71, 1
        %s733 = scalar_lea.sflag [#allocation6], %s732
        %s734 = sand.u32 %s71, 1
        %s735 = smul.addr %s734, 8
        %s736 = scalar_lea.vmem [#allocation5], %s735
        // Predicated region
        $region29: #{tpu_custom_call.1} parent=27 // pred_check
          %p737 = pneg %p81
        $region30: #{tpu_custom_call.1} parent=27 // pred_check_branch
          %739 = sbr.rel (%p737) target = $region32
        $region31: #{tpu_custom_call.1} parent=27 // pred_region
          %s741 = ssub.s32 128, 128
          %742 = vsyncadd %s733, %s741
          %s743 = smul.addr %s16, 2
          %s744 = smul.addr %s743, 64
          %s745 = scalar_lea.hbm %s2, %s744
          %s747 = sshll.u32 %s736, 4
          %s748 = int_to_ptr.vmem [resolvable:$true] %s747
          %750 = dma.vmem_to_hbm [thread:$0]  %s748, 128, %s745, %s733
        $region32: #{tpu_custom_call.1} parent=27 // pred_fallthru
          _
      $region28: #{tpu_custom_call.1} parent=5 // pred_fallthru
        _
      %p751 = scmp.le.s32.totalorder 2, %s11
      // Predicated region
      $region33: #{tpu_custom_call.1} parent=5 // pred_check
        %p752 = pneg %p751
      $region34: #{tpu_custom_call.1} parent=5 // pred_check_branch
        %754 = sbr.rel (%p752) target = $region36
      $region35: #{tpu_custom_call.1} parent=5 // pred_region
        %s755 = ssub.s32 %s11, 2
        // Predicated region
        $region37: #{tpu_custom_call.1} parent=35 // pred_check
          %p756 = pneg %p87
        $region38: #{tpu_custom_call.1} parent=35 // pred_check_branch
          %758 = sbr.rel (%p756) target = $region40
        $region39: #{tpu_custom_call.1} parent=35 // pred_region
          %s759 = sand.u32 %s72, 1
          %s760 = scalar_lea.sflag [#allocation6], %s759
          %s761 = sand.u32 %s72, 1
          %s762 = smul.addr %s761, 8
          %s763 = scalar_lea.vmem [#allocation5], %s762
          %764 = dma.done %s760, 128
        $region40: #{tpu_custom_call.1} parent=35 // pred_fallthru
          _
      $region36: #{tpu_custom_call.1} parent=5 // pred_fallthru
        _
    $region6: #{tpu_custom_call.1} parent=1 // loop_footer
      %s15 = sadd.s32 1, %s11
    $region7: #{tpu_custom_call.1} parent=1 // loop_footer_branch
      %10 = sbr.rel target = $region3
    $region8: #{tpu_custom_call.1} parent=1 // loop_exit
      _
    %765 = vsyncpa [#allocation6], 1
    %s766 = scalar_lea.sflag [#allocation6], 1
    %767 = vsyncpa %s766, 1

</llo_original>
